<compile_context>
chip_gen: v5e
topology: v5e:2x2
jax: 0.10.0
libtpu: 0.0.40
codegen_flags: <defaults>
</compile_context>

<pallas_src>
import functools
import math

import jax
import jax.numpy as jnp
from jax.experimental import pallas as pl
from jax.experimental.pallas import tpu as pltpu

LANE = 128      # TPU lane width: feature dims padded to multiples of this.
SUBLANE = 16    # batch-tile granularity (covers bf16 sublane packing).


def _round_up(n, m):
    return ((n + m - 1) // m) * m


def _vmem_capacity_bytes():
    """Generation-aware VMEM capacity (conservative fallback if query unavailable)."""
    try:
        info = pltpu.get_tpu_info()
        cap = getattr(info, "vmem_capacity_bytes", None)
        if cap:
            return int(cap)
    except Exception:
        pass
    return 64 * 1024 * 1024   # v7x per-TensorCore physical VMEM (most restrictive)


def _fused_mlp_kernel(*refs, out_pads, compute_dtype):
    """Fused MLP body.

    refs = (x_ref, w0_ref, ..., w{L-1}_ref, bias_all_ref, o_ref)
    h = x; for each layer l: h = (ReLU if l != last)(h @ W_l + b_l); o = h.
    Matmuls run in `compute_dtype` (bf16 MXU path) with f32 accumulation;
    bias + ReLU epilogue runs in f32.
    """
    num_layers = len(out_pads)
    x_ref = refs[0]
    w_refs = refs[1:1 + num_layers]
    bias_ref = refs[1 + num_layers]
    o_ref = refs[-1]

    h = x_ref[...]                                   # bf16 tile, no upcast needed
    for l in range(num_layers):
        w = w_refs[l][...]                           # [Din_pad_l, Dout_pad_l], bf16
        dpad = out_pads[l]
        b = bias_ref[l:l + 1, :dpad]                 # [1, Dout_pad_l], f32 (static slice)
        y = jnp.dot(h.astype(compute_dtype), w,
                    preferred_element_type=jnp.float32)
        y = y + b                                    # f32 epilogue
        if l != num_layers - 1:
            y = jnp.maximum(y, 0.0)
        h = y
    o_ref[...] = h.astype(o_ref.dtype)


def init_mlp_params(key, in_channel, layer_dims, *, weight_dtype=jnp.bfloat16):
    """PyTorch nn.Linear-style init (U(+/- 1/sqrt(fan_in))).

    Weights are stored pre-transposed as [in, out], zero-padded to multiples of 128 on
    both feature axes, in bf16 (halves VMEM/HBM). Biases stay f32 for the f32 epilogue.
    """
    params = []
    last = in_channel
    for out_channel in layer_dims:
        key, kw, kb = jax.random.split(key, 3)
        bound = 1.0 / math.sqrt(last)
        w_t = jax.random.uniform(kw, (last, out_channel), jnp.float32, -bound, bound)
        b = jax.random.uniform(kb, (1, out_channel), jnp.float32, -bound, bound)

        in_p, out_p = _round_up(last, LANE), _round_up(out_channel, LANE)
        w_pad = jnp.zeros((in_p, out_p), jnp.float32).at[:last, :out_channel].set(w_t)
        b_pad = jnp.zeros((1, out_p), jnp.float32).at[:, :out_channel].set(b)

        params.append((w_pad.astype(weight_dtype), b_pad))
        last = out_channel
    return params


def mlp_forward(params, x, out_features, *, batch_tile=256,
                compute_dtype=jnp.bfloat16, out_dtype=jnp.float32):
    """Fused MLP forward. x: [B, in_channel] -> [B, out_features]."""
    B, Din = x.shape
    num_layers = len(params)
    Din_pad = params[0][0].shape[0]
    out_pads = tuple(w.shape[1] for w, _ in params)
    Dout_pad = out_pads[-1]
    assert Din <= Din_pad, "input feature dim exceeds padded weight shape"

    # --- Batch tiling (always a multiple of SUBLANE even for odd user batch_tile). ---
    batch_tile = max(SUBLANE, (batch_tile // SUBLANE) * SUBLANE)
    TB = min(_round_up(B, SUBLANE), batch_tile)
    # v7x megacore: make sure the "parallel" batch axis has >= 2 steps when batch allows.
    if B >= 2 * SUBLANE and _round_up(B, TB) // TB < 2:
        TB = _round_up((B + 1) // 2, SUBLANE)
    B_pad = _round_up(B, TB)
    n_btiles = B_pad // TB

    # --- Streamed input in compute dtype (bf16): halves x DMA bytes + buffers. ---
    x_pad = jnp.zeros((B_pad, Din_pad), compute_dtype).at[:B, :Din].set(
        x.astype(compute_dtype))

    # --- Fuse all biases into one sublane-padded f32 array (single DMA / BlockSpec). ---
    max_out_pad = max(out_pads)
    L_pad = _round_up(num_layers, 8)
    bias_all = jnp.zeros((L_pad, max_out_pad), jnp.float32)
    for l, (_, b) in enumerate(params):
        bias_all = bias_all.at[l, :b.shape[1]].set(b[0])

    # --- Cost estimate + explicit VMEM accounting. ---
    flops = sum(2 * B_pad * w.shape[0] * w.shape[1] for w, _ in params)
    weight_bytes = sum(w.size * w.dtype.itemsize for w, _ in params)
    bias_bytes = bias_all.size * bias_all.dtype.itemsize
    x_item = jnp.dtype(compute_dtype).itemsize
    o_item = jnp.dtype(out_dtype).itemsize
    bytes_accessed = (x_pad.size * x_item + weight_bytes + bias_bytes
                      + B_pad * Dout_pad * o_item)

    def _vmem_footprint(resident_buf_count):
        resident = (weight_bytes + bias_bytes) * resident_buf_count
        streamed = 2 * TB * Din_pad * x_item + 2 * TB * Dout_pad * o_item
        max_w = max(Din_pad, max_out_pad)
        activations = 2 * TB * max_w * 4            # f32 intermediates in flight
        return resident + streamed + activations

    vmem_cap = _vmem_capacity_bytes()
    headroom = 2 * 1024 * 1024
    assert _vmem_footprint(1) + headroom <= vmem_cap, (
        f"Fused MLP VMEM footprint {_vmem_footprint(1)} B exceeds device VMEM "
        f"{vmem_cap} B; K/N-tiling of the weights is required (see TODO).")
    vmem_limit = int(min(vmem_cap,
                         max(_vmem_footprint(2) + 4 * 1024 * 1024, 32 * 1024 * 1024)))

    kernel = functools.partial(_fused_mlp_kernel,
                               out_pads=out_pads,
                               compute_dtype=compute_dtype)
    weights = [w for w, _ in params]

    def _invoke(single_buffer_resident):
        # Weights/biases: constant index_map -> VMEM-resident across the batch loop.
        # Buffered(1): no pointless second pipeline buffer for never-changing blocks.
        pm = ({"pipeline_mode": pl.Buffered(1)} if single_buffer_resident else {})
        in_specs = [pl.BlockSpec((TB, Din_pad), lambda i: (i, 0))]
        for w in weights:
            in_specs.append(pl.BlockSpec(w.shape, lambda i: (0, 0), **pm))
        in_specs.append(pl.BlockSpec(bias_all.shape, lambda i: (0, 0), **pm))
        return pl.pallas_call(
            kernel,
            out_shape=jax.ShapeDtypeStruct((B_pad, Dout_pad), out_dtype),
            grid=(n_btiles,),
            in_specs=in_specs,
            out_specs=pl.BlockSpec((TB, Dout_pad), lambda i: (i, 0)),
            compiler_params=pltpu.CompilerParams(
                dimension_semantics=("parallel",),
                vmem_limit_bytes=vmem_limit),
            cost_estimate=pl.CostEstimate(
                flops=flops, transcendentals=0, bytes_accessed=bytes_accessed),
        )(x_pad, *weights, bias_all)

    try:
        out_pad = _invoke(True)
    except Exception:
        # Fallback: this jax build rejects Buffered(1); use default double-buffering.
        out_pad = _invoke(False)

    # Narrow back to the true batch / output width only if padding was added.
    if B_pad == B and Dout_pad == out_features:
        return out_pad
    return out_pad[:B, :out_features]


if __name__ == "__main__":
    key = jax.random.PRNGKey(0)
    key, kx = jax.random.split(key)

    batch = 8
    in_channel = 16
    layer_dims = [32, 64, 10]

    x = jax.random.normal(kx, (batch, in_channel), jnp.float32)
    params = init_mlp_params(key, in_channel, layer_dims)

    out = mlp_forward(params, x, layer_dims[-1])
    jax.block_until_ready(out)
    assert out.shape == (batch, layer_dims[-1])

    # Reference A (kernel correctness): same bf16-matmul / f32-accumulate recipe, plain JAX.
    ref_bf16 = jnp.zeros((batch, params[0][0].shape[0]), jnp.bfloat16).at[:, :in_channel].set(
        x.astype(jnp.bfloat16))
    h = ref_bf16
    for i, (w_pad, b_pad) in enumerate(params):
        h = jnp.dot(h.astype(jnp.bfloat16), w_pad,
                    preferred_element_type=jnp.float32) + b_pad
        if i != len(params) - 1:
            h = jnp.maximum(h, 0.0)
    ref_bf16 = h[:, :layer_dims[-1]]
    assert jnp.allclose(out, ref_bf16, atol=1e-4, rtol=1e-4), (
        f"kernel vs bf16-recipe: max abs err = {jnp.max(jnp.abs(out - ref_bf16))}")

    # Reference B (parity with the f32 PyTorch module semantics, bf16-sized tolerance).
    h = x
    for i, (w_pad, b_pad) in enumerate(params):
        w_f32 = w_pad.astype(jnp.float32)
        h_pad = jnp.zeros((batch, w_f32.shape[0]), jnp.float32).at[:, :h.shape[1]].set(h)
        h = jnp.dot(h_pad, w_f32) + b_pad
        if i != len(params) - 1:
            h = jnp.maximum(h, 0.0)
    ref_f32 = h[:, :layer_dims[-1]]
    assert jnp.allclose(out, ref_f32, atol=5e-2, rtol=5e-2), (
        f"kernel vs f32 reference: max abs err = {jnp.max(jnp.abs(out - ref_f32))}")

    print("KERNEL_OK")
</pallas_src>

<mosaic_0001>
module attributes {stable_mosaic.version = 11 : i64} {
  func.func @_fused_mlp_kernel(%arg0: i32, %arg1: memref<16x128xbf16, #tpu.memory_space<vmem>>, %arg2: memref<128x128xbf16, #tpu.memory_space<vmem>>, %arg3: memref<128x128xbf16, #tpu.memory_space<vmem>>, %arg4: memref<128x128xbf16, #tpu.memory_space<vmem>>, %arg5: memref<8x128xf32, #tpu.memory_space<vmem>>, %arg6: memref<16x128xf32, #tpu.memory_space<vmem>>) attributes {dimension_semantics = [#tpu.dimension_semantics<parallel>], iteration_bounds = array<i64: 1>, scalar_prefetch = 0 : i64, scratch_operands = 0 : i64, tpu.core_type = #tpu.core_type<tc>, window_params = [{transform_indices = @transform_0, window_bounds = array<i64: 16, 128>}, {pipeline_mode = #tpu.pipeline_mode<synchronous>, transform_indices = @transform_1, window_bounds = array<i64: 128, 128>}, {pipeline_mode = #tpu.pipeline_mode<synchronous>, transform_indices = @transform_2, window_bounds = array<i64: 128, 128>}, {pipeline_mode = #tpu.pipeline_mode<synchronous>, transform_indices = @transform_3, window_bounds = array<i64: 128, 128>}, {pipeline_mode = #tpu.pipeline_mode<synchronous>, transform_indices = @transform_4, window_bounds = array<i64: 8, 128>}, {transform_indices = @transform_5, window_bounds = array<i64: 16, 128>}]} {
    %c0 = arith.constant 0 : index
    %c0_0 = arith.constant 0 : index
    %0 = vector.load %arg1[%c0, %c0_0] : memref<16x128xbf16, #tpu.memory_space<vmem>>, vector<16x128xbf16>
    %c0_1 = arith.constant 0 : index
    %c0_2 = arith.constant 0 : index
    %1 = vector.load %arg2[%c0_1, %c0_2] : memref<128x128xbf16, #tpu.memory_space<vmem>>, vector<128x128xbf16>
    %c0_3 = arith.constant 0 : index
    %c0_4 = arith.constant 0 : index
    %2 = vector.load %arg5[%c0_3, %c0_4] : memref<8x128xf32, #tpu.memory_space<vmem>>, vector<1x128xf32>
    %cst = arith.constant dense<0.000000e+00> : vector<16x128xf32>
    %3 = tpu.matmul %0, %1, %cst {dimension_numbers = #tpu.dot_dimension_numbers<[1], [0], [0], [1], [0, 0, 1, 1], [], []>} : vector<16x128xbf16>, vector<128x128xbf16>, vector<16x128xf32> -> vector<16x128xf32>
    %4 = vector.broadcast %2 : vector<1x128xf32> to vector<16x128xf32>
    %5 = arith.addf %3, %4 : vector<16x128xf32>
    %cst_5 = arith.constant 0.000000e+00 : f32
    %6 = vector.broadcast %cst_5 : f32 to vector<16x128xf32>
    %7 = arith.maximumf %5, %6 : vector<16x128xf32>
    %c0_6 = arith.constant 0 : index
    %c0_7 = arith.constant 0 : index
    %8 = vector.load %arg3[%c0_6, %c0_7] : memref<128x128xbf16, #tpu.memory_space<vmem>>, vector<128x128xbf16>
    %c1 = arith.constant 1 : index
    %c0_8 = arith.constant 0 : index
    %9 = vector.load %arg5[%c1, %c0_8] : memref<8x128xf32, #tpu.memory_space<vmem>>, vector<1x128xf32>
    %10 = arith.truncf %7 : vector<16x128xf32> to vector<16x128xbf16>
    %cst_9 = arith.constant dense<0.000000e+00> : vector<16x128xf32>
    %11 = tpu.matmul %10, %8, %cst_9 {dimension_numbers = #tpu.dot_dimension_numbers<[1], [0], [0], [1], [0, 0, 1, 1], [], []>} : vector<16x128xbf16>, vector<128x128xbf16>, vector<16x128xf32> -> vector<16x128xf32>
    %12 = vector.broadcast %9 : vector<1x128xf32> to vector<16x128xf32>
    %13 = arith.addf %11, %12 : vector<16x128xf32>
    %cst_10 = arith.constant 0.000000e+00 : f32
    %14 = vector.broadcast %cst_10 : f32 to vector<16x128xf32>
    %15 = arith.maximumf %13, %14 : vector<16x128xf32>
    %c0_11 = arith.constant 0 : index
    %c0_12 = arith.constant 0 : index
    %16 = vector.load %arg4[%c0_11, %c0_12] : memref<128x128xbf16, #tpu.memory_space<vmem>>, vector<128x128xbf16>
    %c2 = arith.constant 2 : index
    %c0_13 = arith.constant 0 : index
    %17 = vector.load %arg5[%c2, %c0_13] : memref<8x128xf32, #tpu.memory_space<vmem>>, vector<1x128xf32>
    %18 = arith.truncf %15 : vector<16x128xf32> to vector<16x128xbf16>
    %cst_14 = arith.constant dense<0.000000e+00> : vector<16x128xf32>
    %19 = tpu.matmul %18, %16, %cst_14 {dimension_numbers = #tpu.dot_dimension_numbers<[1], [0], [0], [1], [0, 0, 1, 1], [], []>} : vector<16x128xbf16>, vector<128x128xbf16>, vector<16x128xf32> -> vector<16x128xf32>
    %20 = vector.broadcast %17 : vector<1x128xf32> to vector<16x128xf32>
    %21 = arith.addf %19, %20 : vector<16x128xf32>
    %c0_15 = arith.constant 0 : index
    %c0_16 = arith.constant 0 : index
    %22 = vector.load %arg6[%c0_15, %c0_16] : memref<16x128xf32, #tpu.memory_space<vmem>>, vector<16x128xf32>
    tpu.vector_store %arg6[%c0_15, %c0_16], %21 {strides = array<i32>} : memref<16x128xf32, #tpu.memory_space<vmem>>, vector<16x128xf32>,
    return
  }
  func.func @transform_0(%arg0: i32) -> (i32, i32) {
    %c0_i32 = arith.constant 0 : i32
    %c0_i32_0 = arith.constant 0 : i32
    return %arg0, %c0_i32 : i32, i32
  }
  func.func @transform_1(%arg0: i32) -> (i32, i32) {
    %c0_i32 = arith.constant 0 : i32
    %c0_i32_0 = arith.constant 0 : i32
    %c0_i32_1 = arith.constant 0 : i32
    return %c0_i32, %c0_i32_0 : i32, i32
  }
  func.func @transform_2(%arg0: i32) -> (i32, i32) {
    %c0_i32 = arith.constant 0 : i32
    %c0_i32_0 = arith.constant 0 : i32
    %c0_i32_1 = arith.constant 0 : i32
    return %c0_i32, %c0_i32_0 : i32, i32
  }
  func.func @transform_3(%arg0: i32) -> (i32, i32) {
    %c0_i32 = arith.constant 0 : i32
    %c0_i32_0 = arith.constant 0 : i32
    %c0_i32_1 = arith.constant 0 : i32
    return %c0_i32, %c0_i32_0 : i32, i32
  }
  func.func @transform_4(%arg0: i32) -> (i32, i32) {
    %c0_i32 = arith.constant 0 : i32
    %c0_i32_0 = arith.constant 0 : i32
    %c0_i32_1 = arith.constant 0 : i32
    return %c0_i32, %c0_i32_0 : i32, i32
  }
  func.func @transform_5(%arg0: i32) -> (i32, i32) {
    %c0_i32 = arith.constant 0 : i32
    %c0_i32_0 = arith.constant 0 : i32
    return %arg0, %c0_i32 : i32, i32
  }
}

module attributes {stable_mosaic.version = 11 : i64} {
  func.func @_fused_mlp_kernel(%arg0: i32, %arg1: memref<16x128xbf16, #tpu.memory_space<vmem>>, %arg2: memref<128x128xbf16, #tpu.memory_space<vmem>>, %arg3: memref<128x128xbf16, #tpu.memory_space<vmem>>, %arg4: memref<128x128xbf16, #tpu.memory_space<vmem>>, %arg5: memref<8x128xf32, #tpu.memory_space<vmem>>, %arg6: memref<16x128xf32, #tpu.memory_space<vmem>>) attributes {dimension_semantics = [#tpu.dimension_semantics<parallel>], iteration_bounds = array<i64: 1>, scalar_prefetch = 0 : i64, scratch_operands = 0 : i64, tpu.core_type = #tpu.core_type<tc>, window_params = [{transform_indices = @transform_0, window_bounds = array<i64: 16, 128>}, {pipeline_mode = #tpu.pipeline_mode<synchronous>, transform_indices = @transform_1, window_bounds = array<i64: 128, 128>}, {pipeline_mode = #tpu.pipeline_mode<synchronous>, transform_indices = @transform_2, window_bounds = array<i64: 128, 128>}, {pipeline_mode = #tpu.pipeline_mode<synchronous>, transform_indices = @transform_3, window_bounds = array<i64: 128, 128>}, {pipeline_mode = #tpu.pipeline_mode<synchronous>, transform_indices = @transform_4, window_bounds = array<i64: 8, 128>}, {transform_indices = @transform_5, window_bounds = array<i64: 16, 128>}]} {
    %c0 = arith.constant 0 : index
    %c0_0 = arith.constant 0 : index
    %0 = vector.load %arg1[%c0, %c0_0] : memref<16x128xbf16, #tpu.memory_space<vmem>>, vector<16x128xbf16>
    %c0_1 = arith.constant 0 : index
    %c0_2 = arith.constant 0 : index
    %1 = vector.load %arg2[%c0_1, %c0_2] : memref<128x128xbf16, #tpu.memory_space<vmem>>, vector<128x128xbf16>
    %c0_3 = arith.constant 0 : index
    %c0_4 = arith.constant 0 : index
    %2 = vector.load %arg5[%c0_3, %c0_4] : memref<8x128xf32, #tpu.memory_space<vmem>>, vector<1x128xf32>
    %cst = arith.constant dense<0.000000e+00> : vector<16x128xf32>
    %3 = tpu.matmul %0, %1, %cst {dimension_numbers = #tpu.dot_dimension_numbers<[1], [0], [0], [1], [0, 0, 1, 1], [], []>} : vector<16x128xbf16>, vector<128x128xbf16>, vector<16x128xf32> -> vector<16x128xf32>
    %4 = vector.broadcast %2 : vector<1x128xf32> to vector<16x128xf32>
    %5 = arith.addf %3, %4 : vector<16x128xf32>
    %cst_5 = arith.constant 0.000000e+00 : f32
    %6 = vector.broadcast %cst_5 : f32 to vector<16x128xf32>
    %7 = arith.maximumf %5, %6 : vector<16x128xf32>
    %c0_6 = arith.constant 0 : index
    %c0_7 = arith.constant 0 : index
    %8 = vector.load %arg3[%c0_6, %c0_7] : memref<128x128xbf16, #tpu.memory_space<vmem>>, vector<128x128xbf16>
    %c1 = arith.constant 1 : index
    %c0_8 = arith.constant 0 : index
    %9 = vector.load %arg5[%c1, %c0_8] : memref<8x128xf32, #tpu.memory_space<vmem>>, vector<1x128xf32>
    %10 = arith.truncf %7 : vector<16x128xf32> to vector<16x128xbf16>
    %cst_9 = arith.constant dense<0.000000e+00> : vector<16x128xf32>
    %11 = tpu.matmul %10, %8, %cst_9 {dimension_numbers = #tpu.dot_dimension_numbers<[1], [0], [0], [1], [0, 0, 1, 1], [], []>} : vector<16x128xbf16>, vector<128x128xbf16>, vector<16x128xf32> -> vector<16x128xf32>
    %12 = vector.broadcast %9 : vector<1x128xf32> to vector<16x128xf32>
    %13 = arith.addf %11, %12 : vector<16x128xf32>
    %cst_10 = arith.constant 0.000000e+00 : f32
    %14 = vector.broadcast %cst_10 : f32 to vector<16x128xf32>
    %15 = arith.maximumf %13, %14 : vector<16x128xf32>
    %c0_11 = arith.constant 0 : index
    %c0_12 = arith.constant 0 : index
    %16 = vector.load %arg4[%c0_11, %c0_12] : memref<128x128xbf16, #tpu.memory_space<vmem>>, vector<128x128xbf16>
    %c2 = arith.constant 2 : index
    %c0_13 = arith.constant 0 : index
    %17 = vector.load %arg5[%c2, %c0_13] : memref<8x128xf32, #tpu.memory_space<vmem>>, vector<1x128xf32>
    %18 = arith.truncf %15 : vector<16x128xf32> to vector<16x128xbf16>
    %cst_14 = arith.constant dense<0.000000e+00> : vector<16x128xf32>
    %19 = tpu.matmul %18, %16, %cst_14 {dimension_numbers = #tpu.dot_dimension_numbers<[1], [0], [0], [1], [0, 0, 1, 1], [], []>} : vector<16x128xbf16>, vector<128x128xbf16>, vector<16x128xf32> -> vector<16x128xf32>
    %20 = vector.broadcast %17 : vector<1x128xf32> to vector<16x128xf32>
    %21 = arith.addf %19, %20 : vector<16x128xf32>
    %c0_15 = arith.constant 0 : index
    %c0_16 = arith.constant 0 : index
    %22 = vector.load %arg6[%c0_15, %c0_16] : memref<16x128xf32, #tpu.memory_space<vmem>>, vector<16x128xf32>
    tpu.vector_store %arg6[%c0_15, %c0_16], %21 {strides = array<i32>} : memref<16x128xf32, #tpu.memory_space<vmem>>, vector<16x128xf32>,
    return
  }
  func.func @transform_0(%arg0: i32) -> (i32, i32) {
    %c0_i32 = arith.constant 0 : i32
    %c0_i32_0 = arith.constant 0 : i32
    return %arg0, %c0_i32 : i32, i32
  }
  func.func @transform_1(%arg0: i32) -> (i32, i32) {
    %c0_i32 = arith.constant 0 : i32
    %c0_i32_0 = arith.constant 0 : i32
    %c0_i32_1 = arith.constant 0 : i32
    return %c0_i32, %c0_i32_0 : i32, i32
  }
  func.func @transform_2(%arg0: i32) -> (i32, i32) {
    %c0_i32 = arith.constant 0 : i32
    %c0_i32_0 = arith.constant 0 : i32
    %c0_i32_1 = arith.constant 0 : i32
    return %c0_i32, %c0_i32_0 : i32, i32
  }
  func.func @transform_3(%arg0: i32) -> (i32, i32) {
    %c0_i32 = arith.constant 0 : i32
    %c0_i32_0 = arith.constant 0 : i32
    %c0_i32_1 = arith.constant 0 : i32
    return %c0_i32, %c0_i32_0 : i32, i32
  }
  func.func @transform_4(%arg0: i32) -> (i32, i32) {
    %c0_i32 = arith.constant 0 : i32
    %c0_i32_0 = arith.constant 0 : i32
    %c0_i32_1 = arith.constant 0 : i32
    return %c0_i32, %c0_i32_0 : i32, i32
  }
  func.func @transform_5(%arg0: i32) -> (i32, i32) {
    %c0_i32 = arith.constant 0 : i32
    %c0_i32_0 = arith.constant 0 : i32
    return %arg0, %c0_i32 : i32, i32
  }
}

</mosaic_0001>

<llo_original>
// kernel: tpu_custom_call.1
$region0: #{tpu_custom_call.1}
  #allocation0 [shape = 'u32[]', space=smem, size = 0x4, offset = 0x4, fixed_abs, tag = 'smem constant byte address 0x4 - core index']
  #allocation1 [shape = 'u32[72,128]{1,0:T(1,128)}', space=vmem, size = 0x9000, scoped, tag = 'internal scratch']
  %s0 = inlined_call_operand.hbm [shape: bf16[16,128], index: 0, kind: input, shape index: {}]
  %s1 = inlined_call_operand.hbm [shape: bf16[128,128], index: 1, kind: input, shape index: {}]
  %s2 = inlined_call_operand.hbm [shape: bf16[128,128], index: 2, kind: input, shape index: {}]
  %s3 = inlined_call_operand.hbm [shape: bf16[128,128], index: 3, kind: input, shape index: {}]
  %s4 = inlined_call_operand.hbm [shape: f32[8,128], index: 4, kind: input, shape index: {}]
  %s5 = inlined_call_operand.hbm [shape: f32[16,128], index: 5, kind: output, shape index: {}]
  %s6 = sld [smem:[#allocation0]]
  $region50: #{tpu_custom_call.1} parent=0
    _
  %s8 = ssub.s32 1, %s6
  %s9 = scalar_select 0, %s8, %s6
  $region1: #{tpu_custom_call.1} parent=0
    #allocation2 [shape = 'u8[4096]{0}', space=vmem, size = 0x1000, scoped, tag = 'input window, operand 0, single buffered']
    #allocation3 [shape = 's32[1]{0}', space=sflag, size = 0x4, scoped, tag = 'scoped memory for tpu_custom_call.1']
    #allocation4 [shape = 's32[1]{0}', space=sflag, size = 0x4, scoped, tag = 'scoped memory for tpu_custom_call.1']
    #allocation5 [shape = 'u8[32768]{0}', space=vmem, size = 0x8000, scoped, tag = 'input window, operand 1, single buffered']
    #allocation6 [shape = 's32[1]{0}', space=sflag, size = 0x4, scoped, tag = 'scoped memory for tpu_custom_call.1']
    #allocation7 [shape = 'u8[32768]{0}', space=vmem, size = 0x8000, scoped, tag = 'input window, operand 2, single buffered']
    #allocation8 [shape = 'u8[32768]{0}', space=vmem, size = 0x8000, scoped, tag = 'input window, operand 3, single buffered']
    #allocation9 [shape = 's32[1]{0}', space=sflag, size = 0x4, scoped, tag = 'scoped memory for tpu_custom_call.1']
    #allocation10 [shape = 'u8[4096]{0}', space=vmem, size = 0x1000, scoped, tag = 'input window, operand 4, single buffered']
    #allocation11 [shape = 'u8[8192]{0}', space=vmem, size = 0x2000, scoped, tag = 'output window, operand 0, single buffered']
    %10 = vsyncpa [#allocation3], 0
    %11 = vsyncpa [#allocation6], 0
    %12 = vsyncpa [#allocation9], 0
    %13 = vsyncpa [#allocation4], 0
    // Predicated region
    $region2: #{tpu_custom_call.1} parent=1 // pred_check
      _
    $region3: #{tpu_custom_call.1} parent=1 // pred_check_branch
      %15 = sbr.rel (0) target = $region5
    $region4: #{tpu_custom_call.1} parent=1 // pred_region
      %17 = vsyncadd [#allocation3], 0
      %s18 = sshll.u32 %s0, 4
      %s19 = int_to_ptr.hbm [resolvable:$true] %s18
      %s20 = sshll.u32 [#allocation2], 4
      %s21 = int_to_ptr.vmem [resolvable:$true] %s20
      %26 = dma.hbm_to_vmem [thread:$0]  %s19, 128, %s21, [#allocation3], 64, 64, 4
    $region5: #{tpu_custom_call.1} parent=1 // pred_fallthru
      _
    // Predicated region
    $region6: #{tpu_custom_call.1} parent=1 // pred_check
      _
    $region7: #{tpu_custom_call.1} parent=1 // pred_check_branch
      %28 = sbr.rel (0) target = $region9
    $region8: #{tpu_custom_call.1} parent=1 // pred_region
      %30 = vsyncadd [#allocation6], 0
      %s31 = sshll.u32 %s1, 4
      %s32 = int_to_ptr.hbm [resolvable:$true] %s31
      %s33 = sshll.u32 [#allocation5], 4
      %s34 = int_to_ptr.vmem [resolvable:$true] %s33
      %39 = dma.hbm_to_vmem [thread:$0]  %s32, 1024, %s34, [#allocation6], 64, 64, 4
    $region9: #{tpu_custom_call.1} parent=1 // pred_fallthru
      _
    // Predicated region
    $region10: #{tpu_custom_call.1} parent=1 // pred_check
      _
    $region11: #{tpu_custom_call.1} parent=1 // pred_check_branch
      %41 = sbr.rel (0) target = $region13
    $region12: #{tpu_custom_call.1} parent=1 // pred_region
      %43 = vsyncadd [#allocation6], 0
      %s44 = sshll.u32 %s2, 4
      %s45 = int_to_ptr.hbm [resolvable:$true] %s44
      %s46 = sshll.u32 [#allocation7], 4
      %s47 = int_to_ptr.vmem [resolvable:$true] %s46
      %52 = dma.hbm_to_vmem [thread:$0]  %s45, 1024, %s47, [#allocation6], 64, 64, 4
    $region13: #{tpu_custom_call.1} parent=1 // pred_fallthru
      _
    // Predicated region
    $region14: #{tpu_custom_call.1} parent=1 // pred_check
      _
    $region15: #{tpu_custom_call.1} parent=1 // pred_check_branch
      %54 = sbr.rel (0) target = $region17
    $region16: #{tpu_custom_call.1} parent=1 // pred_region
      %56 = vsyncadd [#allocation9], 0
      %s57 = sshll.u32 %s3, 4
      %s58 = int_to_ptr.hbm [resolvable:$true] %s57
      %s59 = sshll.u32 [#allocation8], 4
      %s60 = int_to_ptr.vmem [resolvable:$true] %s59
      %65 = dma.hbm_to_vmem [thread:$0]  %s58, 1024, %s60, [#allocation9], 64, 64, 4
    $region17: #{tpu_custom_call.1} parent=1 // pred_fallthru
      _
    // Predicated region
    $region18: #{tpu_custom_call.1} parent=1 // pred_check
      _
    $region19: #{tpu_custom_call.1} parent=1 // pred_check_branch
      %67 = sbr.rel (0) target = $region21
    $region20: #{tpu_custom_call.1} parent=1 // pred_region
      %69 = vsyncadd [#allocation9], 0
      %s71 = sshll.u32 %s4, 4
      %s72 = int_to_ptr.hbm [resolvable:$true] %s71
      %s73 = sshll.u32 [#allocation10], 4
      %s74 = int_to_ptr.vmem [resolvable:$true] %s73
      %76 = dma.hbm_to_vmem [thread:$0]  %s72, 128, %s74, [#allocation9]
    $region21: #{tpu_custom_call.1} parent=1 // pred_fallthru
      _
    // Predicated region
    $region22: #{tpu_custom_call.1} parent=1 // pred_check
      _
    $region23: #{tpu_custom_call.1} parent=1 // pred_check_branch
      %78 = sbr.rel (0) target = $region25
    $region24: #{tpu_custom_call.1} parent=1 // pred_region
      %80 = dma.done [#allocation3], 128
    $region25: #{tpu_custom_call.1} parent=1 // pred_fallthru
      _
    // Predicated region
    $region26: #{tpu_custom_call.1} parent=1 // pred_check
      _
    $region27: #{tpu_custom_call.1} parent=1 // pred_check_branch
      %82 = sbr.rel (0) target = $region29
    $region28: #{tpu_custom_call.1} parent=1 // pred_region
      %84 = dma.done [#allocation6], 1024
    $region29: #{tpu_custom_call.1} parent=1 // pred_fallthru
      _
    // Predicated region
    $region30: #{tpu_custom_call.1} parent=1 // pred_check
      _
    $region31: #{tpu_custom_call.1} parent=1 // pred_check_branch
      %86 = sbr.rel (0) target = $region33
    $region32: #{tpu_custom_call.1} parent=1 // pred_region
      %88 = dma.done [#allocation6], 1024
    $region33: #{tpu_custom_call.1} parent=1 // pred_fallthru
      _
    // Predicated region
    $region34: #{tpu_custom_call.1} parent=1 // pred_check
      _
    $region35: #{tpu_custom_call.1} parent=1 // pred_check_branch
      %90 = sbr.rel (0) target = $region37
    $region36: #{tpu_custom_call.1} parent=1 // pred_region
      %92 = dma.done [#allocation9], 1024
    $region37: #{tpu_custom_call.1} parent=1 // pred_fallthru
      _
    // Predicated region
    $region38: #{tpu_custom_call.1} parent=1 // pred_check
      _
    $region39: #{tpu_custom_call.1} parent=1 // pred_check_branch
      %94 = sbr.rel (0) target = $region41
    $region40: #{tpu_custom_call.1} parent=1 // pred_region
      %96 = dma.done [#allocation9], 128
    $region41: #{tpu_custom_call.1} parent=1 // pred_fallthru
      _
    %v97 = vld [vmem:[#allocation2] sm:$0xf]
    %v98 = vld [vmem:[#allocation2 + $0x4] sm:$0xf]
    %v99 = vld [vmem:[#allocation5] sm:$0xf]
    %v100 = vld [vmem:[#allocation5 + $0x4] sm:$0xf]
    %v101 = vld [vmem:[#allocation5 + $0x8] sm:$0xf]
    %v102 = vld [vmem:[#allocation5 + $0xc] sm:$0xf]
    %v103 = vld [vmem:[#allocation5 + $0x10] sm:$0xf]
    %v104 = vld [vmem:[#allocation5 + $0x14] sm:$0xf]
    %v105 = vld [vmem:[#allocation5 + $0x18] sm:$0xf]
    %v106 = vld [vmem:[#allocation5 + $0x1c] sm:$0xf]
    %v107 = vld [vmem:[#allocation5 + $0x20] sm:$0xf]
    %v108 = vld [vmem:[#allocation5 + $0x24] sm:$0xf]
    %v109 = vld [vmem:[#allocation5 + $0x28] sm:$0xf]
    %v110 = vld [vmem:[#allocation5 + $0x2c] sm:$0xf]
    %v111 = vld [vmem:[#allocation5 + $0x30] sm:$0xf]
    %v112 = vld [vmem:[#allocation5 + $0x34] sm:$0xf]
    %v113 = vld [vmem:[#allocation5 + $0x38] sm:$0xf]
    %v114 = vld [vmem:[#allocation5 + $0x3c] sm:$0xf]
    %v115 = vld [vmem:[#allocation10] sm:$0x1]
    %v116 = vperm.slane %v115, 0
    %v119 = vunpack.c.l.b16 %v97
    %v120 = vunpack.c.l.b16 %v98
    %v121 = vpack.c.b16 %v120, %v119
    %v139 = vunpack.c.l.b16 %v99
    %v140 = vunpack.c.l.b16 %v100
    %v141 = vunpack.c.l.b16 %v101
    %v142 = vunpack.c.l.b16 %v102
    %v143 = vunpack.c.l.b16 %v103
    %v144 = vunpack.c.l.b16 %v104
    %v145 = vunpack.c.l.b16 %v105
    %v146 = vunpack.c.l.b16 %v106
    %v147 = vunpack.c.l.b16 %v107
    %v148 = vunpack.c.l.b16 %v108
    %v149 = vunpack.c.l.b16 %v109
    %v150 = vunpack.c.l.b16 %v110
    %v151 = vunpack.c.l.b16 %v111
    %v152 = vunpack.c.l.b16 %v112
    %v153 = vunpack.c.l.b16 %v113
    %v154 = vunpack.c.l.b16 %v114
    %v155 = vpack.c.b16 %v140, %v139
    %v156 = vpack.c.b16 %v142, %v141
    %v157 = vpack.c.b16 %v144, %v143
    %v158 = vpack.c.b16 %v146, %v145
    %v159 = vpack.c.b16 %v148, %v147
    %v160 = vpack.c.b16 %v150, %v149
    %v161 = vpack.c.b16 %v152, %v151
    %v162 = vpack.c.b16 %v154, %v153
    %171 = vmatpush.bf16.msra.mxu0 %v162
    %172 = vmatpush.bf16.msra.mxu0 %v161
    %173 = vmatpush.bf16.msra.mxu0 %v160
    %174 = vmatpush.bf16.msra.mxu0 %v159
    %175 = vmatpush.bf16.msra.mxu0 %v158
    %176 = vmatpush.bf16.msra.mxu0 %v157
    %177 = vmatpush.bf16.msra.mxu0 %v156
    %178 = vmatpush.bf16.msra.mxu0 %v155
    %179 = vmatmul.bf16.gmra.mxu0 %v121
    %v180 = vpop.f32.mrf.mxu0
    %v181 = vadd.f32 %v116, %v180
    %v182 = vpop.f32.mrf.mxu0
    %v183 = vadd.f32 %v116, %v182
    %184 = vdwg.mxu0
    %v185 = vmax.f32 %v181, 0.0
    %v186 = vmax.f32 %v183, 0.0
    %v187 = vld [vmem:[#allocation7] sm:$0xf]
    %v188 = vld [vmem:[#allocation7 + $0x4] sm:$0xf]
    %v189 = vld [vmem:[#allocation7 + $0x8] sm:$0xf]
    %v190 = vld [vmem:[#allocation7 + $0xc] sm:$0xf]
    %v191 = vld [vmem:[#allocation7 + $0x10] sm:$0xf]
    %v192 = vld [vmem:[#allocation7 + $0x14] sm:$0xf]
    %v193 = vld [vmem:[#allocation7 + $0x18] sm:$0xf]
    %v194 = vld [vmem:[#allocation7 + $0x1c] sm:$0xf]
    %v195 = vld [vmem:[#allocation7 + $0x20] sm:$0xf]
    %v196 = vld [vmem:[#allocation7 + $0x24] sm:$0xf]
    %v197 = vld [vmem:[#allocation7 + $0x28] sm:$0xf]
    %v198 = vld [vmem:[#allocation7 + $0x2c] sm:$0xf]
    %v199 = vld [vmem:[#allocation7 + $0x30] sm:$0xf]
    %v200 = vld [vmem:[#allocation7 + $0x34] sm:$0xf]
    %v201 = vld [vmem:[#allocation7 + $0x38] sm:$0xf]
    %v202 = vld [vmem:[#allocation7 + $0x3c] sm:$0xf]
    %v203 = vld [vmem:[#allocation10 + $0x1] sm:$0x1]
    %v204 = vpack.c.bf16 %v186, %v185
    %v205 = vperm.slane %v203, 0
    %v222 = vunpack.c.l.b16 %v187
    %v223 = vunpack.c.l.b16 %v188
    %v224 = vunpack.c.l.b16 %v189
    %v225 = vunpack.c.l.b16 %v190
    %v226 = vunpack.c.l.b16 %v191
    %v227 = vunpack.c.l.b16 %v192
    %v228 = vunpack.c.l.b16 %v193
    %v229 = vunpack.c.l.b16 %v194
    %v230 = vunpack.c.l.b16 %v195
    %v231 = vunpack.c.l.b16 %v196
    %v232 = vunpack.c.l.b16 %v197
    %v233 = vunpack.c.l.b16 %v198
    %v234 = vunpack.c.l.b16 %v199
    %v235 = vunpack.c.l.b16 %v200
    %v236 = vunpack.c.l.b16 %v201
    %v237 = vunpack.c.l.b16 %v202
    %v238 = vpack.c.b16 %v223, %v222
    %v239 = vpack.c.b16 %v225, %v224
    %v240 = vpack.c.b16 %v227, %v226
    %v241 = vpack.c.b16 %v229, %v228
    %v242 = vpack.c.b16 %v231, %v230
    %v243 = vpack.c.b16 %v233, %v232
    %v244 = vpack.c.b16 %v235, %v234
    %v245 = vpack.c.b16 %v237, %v236
    %254 = vmatpush.bf16.msra.mxu0 %v245
    %255 = vmatpush.bf16.msra.mxu0 %v244
    %256 = vmatpush.bf16.msra.mxu0 %v243
    %257 = vmatpush.bf16.msra.mxu0 %v242
    %258 = vmatpush.bf16.msra.mxu0 %v241
    %259 = vmatpush.bf16.msra.mxu0 %v240
    %260 = vmatpush.bf16.msra.mxu0 %v239
    %261 = vmatpush.bf16.msra.mxu0 %v238
    %262 = vmatmul.bf16.gmra.mxu0 %v204
    %v263 = vpop.f32.mrf.mxu0
    %v264 = vadd.f32 %v205, %v263
    %v265 = vpop.f32.mrf.mxu0
    %v266 = vadd.f32 %v205, %v265
    %267 = vdwg.mxu0
    %v268 = vmax.f32 %v264, 0.0
    %v269 = vmax.f32 %v266, 0.0
    %v270 = vld [vmem:[#allocation8] sm:$0xf]
    %v271 = vld [vmem:[#allocation8 + $0x4] sm:$0xf]
    %v272 = vld [vmem:[#allocation8 + $0x8] sm:$0xf]
    %v273 = vld [vmem:[#allocation8 + $0xc] sm:$0xf]
    %v274 = vld [vmem:[#allocation8 + $0x10] sm:$0xf]
    %v275 = vld [vmem:[#allocation8 + $0x14] sm:$0xf]
    %v276 = vld [vmem:[#allocation8 + $0x18] sm:$0xf]
    %v277 = vld [vmem:[#allocation8 + $0x1c] sm:$0xf]
    %v278 = vld [vmem:[#allocation8 + $0x20] sm:$0xf]
    %v279 = vld [vmem:[#allocation8 + $0x24] sm:$0xf]
    %v280 = vld [vmem:[#allocation8 + $0x28] sm:$0xf]
    %v281 = vld [vmem:[#allocation8 + $0x2c] sm:$0xf]
    %v282 = vld [vmem:[#allocation8 + $0x30] sm:$0xf]
    %v283 = vld [vmem:[#allocation8 + $0x34] sm:$0xf]
    %v284 = vld [vmem:[#allocation8 + $0x38] sm:$0xf]
    %v285 = vld [vmem:[#allocation8 + $0x3c] sm:$0xf]
    %v286 = vld [vmem:[#allocation10 + $0x2] sm:$0x1]
    %v287 = vpack.c.bf16 %v269, %v268
    %v288 = vperm.slane %v286, 0
    %v305 = vunpack.c.l.b16 %v270
    %v306 = vunpack.c.l.b16 %v271
    %v307 = vunpack.c.l.b16 %v272
    %v308 = vunpack.c.l.b16 %v273
    %v309 = vunpack.c.l.b16 %v274
    %v310 = vunpack.c.l.b16 %v275
    %v311 = vunpack.c.l.b16 %v276
    %v312 = vunpack.c.l.b16 %v277
    %v313 = vunpack.c.l.b16 %v278
    %v314 = vunpack.c.l.b16 %v279
    %v315 = vunpack.c.l.b16 %v280
    %v316 = vunpack.c.l.b16 %v281
    %v317 = vunpack.c.l.b16 %v282
    %v318 = vunpack.c.l.b16 %v283
    %v319 = vunpack.c.l.b16 %v284
    %v320 = vunpack.c.l.b16 %v285
    %v321 = vpack.c.b16 %v306, %v305
    %v322 = vpack.c.b16 %v308, %v307
    %v323 = vpack.c.b16 %v310, %v309
    %v324 = vpack.c.b16 %v312, %v311
    %v325 = vpack.c.b16 %v314, %v313
    %v326 = vpack.c.b16 %v316, %v315
    %v327 = vpack.c.b16 %v318, %v317
    %v328 = vpack.c.b16 %v320, %v319
    %337 = vmatpush.bf16.msra.mxu0 %v328
    %338 = vmatpush.bf16.msra.mxu0 %v327
    %339 = vmatpush.bf16.msra.mxu0 %v326
    %340 = vmatpush.bf16.msra.mxu0 %v325
    %341 = vmatpush.bf16.msra.mxu0 %v324
    %342 = vmatpush.bf16.msra.mxu0 %v323
    %343 = vmatpush.bf16.msra.mxu0 %v322
    %344 = vmatpush.bf16.msra.mxu0 %v321
    %345 = vmatmul.bf16.gmra.mxu0 %v287
    %v346 = vpop.f32.mrf.mxu0
    %v347 = vadd.f32 %v288, %v346
    %v348 = vpop.f32.mrf.mxu0
    %v349 = vadd.f32 %v288, %v348
    %350 = vdwg.mxu0
    %351 = vst [vmem:[#allocation11] sm:$0xff] %v347
    %352 = vst [vmem:[#allocation11 + $0x8] sm:$0xff] %v349
    // Predicated region
    $region42: #{tpu_custom_call.1} parent=1 // pred_check
      _
    $region43: #{tpu_custom_call.1} parent=1 // pred_check_branch
      %354 = sbr.rel (0) target = $region45
    $region44: #{tpu_custom_call.1} parent=1 // pred_region
      %356 = vsyncadd [#allocation4], 0
      %s357 = sshll.u32 [#allocation11], 4
      %s358 = int_to_ptr.vmem [resolvable:$true] %s357
      %s359 = sshll.u32 %s5, 4
      %s360 = int_to_ptr.hbm [resolvable:$true] %s359
      %365 = dma.vmem_to_hbm [thread:$0]  %s358, 256, %s360, [#allocation4], 128, 128, 8
    $region45: #{tpu_custom_call.1} parent=1 // pred_fallthru
      _
    // Predicated region
    $region46: #{tpu_custom_call.1} parent=1 // pred_check
      _
    $region47: #{tpu_custom_call.1} parent=1 // pred_check_branch
      %367 = sbr.rel (0) target = $region49
    $region48: #{tpu_custom_call.1} parent=1 // pred_region
      %369 = dma.done [#allocation4], 256
    $region49: #{tpu_custom_call.1} parent=1 // pred_fallthru
      _
    %370 = vsyncpa [#allocation3], 1
    %371 = vsyncpa [#allocation6], 1
    %372 = vsyncpa [#allocation9], 1
    %373 = vsyncpa [#allocation4], 1

// kernel: tpu_custom_call.1
$region0: #{tpu_custom_call.1}
  #allocation0 [shape = 'u32[]', space=smem, size = 0x4, offset = 0x4, fixed_abs, tag = 'smem constant byte address 0x4 - core index']
  #allocation1 [shape = 'u32[72,128]{1,0:T(1,128)}', space=vmem, size = 0x9000, scoped, tag = 'internal scratch']
  %s0 = inlined_call_operand.hbm [shape: bf16[16,128], index: 0, kind: input, shape index: {}]
  %s1 = inlined_call_operand.hbm [shape: bf16[128,128], index: 1, kind: input, shape index: {}]
  %s2 = inlined_call_operand.hbm [shape: bf16[128,128], index: 2, kind: input, shape index: {}]
  %s3 = inlined_call_operand.hbm [shape: bf16[128,128], index: 3, kind: input, shape index: {}]
  %s4 = inlined_call_operand.hbm [shape: f32[8,128], index: 4, kind: input, shape index: {}]
  %s5 = inlined_call_operand.hbm [shape: f32[16,128], index: 5, kind: output, shape index: {}]
  %s6 = sld [smem:[#allocation0]]
  $region50: #{tpu_custom_call.1} parent=0
    _
  %s8 = ssub.s32 1, %s6
  %s9 = scalar_select 0, %s8, %s6
  $region1: #{tpu_custom_call.1} parent=0
    #allocation2 [shape = 'u8[4096]{0}', space=vmem, size = 0x1000, scoped, tag = 'input window, operand 0, single buffered']
    #allocation3 [shape = 's32[1]{0}', space=sflag, size = 0x4, scoped, tag = 'scoped memory for tpu_custom_call.1']
    #allocation4 [shape = 's32[1]{0}', space=sflag, size = 0x4, scoped, tag = 'scoped memory for tpu_custom_call.1']
    #allocation5 [shape = 'u8[32768]{0}', space=vmem, size = 0x8000, scoped, tag = 'input window, operand 1, single buffered']
    #allocation6 [shape = 's32[1]{0}', space=sflag, size = 0x4, scoped, tag = 'scoped memory for tpu_custom_call.1']
    #allocation7 [shape = 'u8[32768]{0}', space=vmem, size = 0x8000, scoped, tag = 'input window, operand 2, single buffered']
    #allocation8 [shape = 'u8[32768]{0}', space=vmem, size = 0x8000, scoped, tag = 'input window, operand 3, single buffered']
    #allocation9 [shape = 's32[1]{0}', space=sflag, size = 0x4, scoped, tag = 'scoped memory for tpu_custom_call.1']
    #allocation10 [shape = 'u8[4096]{0}', space=vmem, size = 0x1000, scoped, tag = 'input window, operand 4, single buffered']
    #allocation11 [shape = 'u8[8192]{0}', space=vmem, size = 0x2000, scoped, tag = 'output window, operand 0, single buffered']
    %10 = vsyncpa [#allocation3], 0
    %11 = vsyncpa [#allocation6], 0
    %12 = vsyncpa [#allocation9], 0
    %13 = vsyncpa [#allocation4], 0
    // Predicated region
    $region2: #{tpu_custom_call.1} parent=1 // pred_check
      _
    $region3: #{tpu_custom_call.1} parent=1 // pred_check_branch
      %15 = sbr.rel (0) target = $region5
    $region4: #{tpu_custom_call.1} parent=1 // pred_region
      %17 = vsyncadd [#allocation3], 0
      %s18 = sshll.u32 %s0, 4
      %s19 = int_to_ptr.hbm [resolvable:$true] %s18
      %s20 = sshll.u32 [#allocation2], 4
      %s21 = int_to_ptr.vmem [resolvable:$true] %s20
      %26 = dma.hbm_to_vmem [thread:$0]  %s19, 128, %s21, [#allocation3], 64, 64, 4
    $region5: #{tpu_custom_call.1} parent=1 // pred_fallthru
      _
    // Predicated region
    $region6: #{tpu_custom_call.1} parent=1 // pred_check
      _
    $region7: #{tpu_custom_call.1} parent=1 // pred_check_branch
      %28 = sbr.rel (0) target = $region9
    $region8: #{tpu_custom_call.1} parent=1 // pred_region
      %30 = vsyncadd [#allocation6], 0
      %s31 = sshll.u32 %s1, 4
      %s32 = int_to_ptr.hbm [resolvable:$true] %s31
      %s33 = sshll.u32 [#allocation5], 4
      %s34 = int_to_ptr.vmem [resolvable:$true] %s33
      %39 = dma.hbm_to_vmem [thread:$0]  %s32, 1024, %s34, [#allocation6], 64, 64, 4
    $region9: #{tpu_custom_call.1} parent=1 // pred_fallthru
      _
    // Predicated region
    $region10: #{tpu_custom_call.1} parent=1 // pred_check
      _
    $region11: #{tpu_custom_call.1} parent=1 // pred_check_branch
      %41 = sbr.rel (0) target = $region13
    $region12: #{tpu_custom_call.1} parent=1 // pred_region
      %43 = vsyncadd [#allocation6], 0
      %s44 = sshll.u32 %s2, 4
      %s45 = int_to_ptr.hbm [resolvable:$true] %s44
      %s46 = sshll.u32 [#allocation7], 4
      %s47 = int_to_ptr.vmem [resolvable:$true] %s46
      %52 = dma.hbm_to_vmem [thread:$0]  %s45, 1024, %s47, [#allocation6], 64, 64, 4
    $region13: #{tpu_custom_call.1} parent=1 // pred_fallthru
      _
    // Predicated region
    $region14: #{tpu_custom_call.1} parent=1 // pred_check
      _
    $region15: #{tpu_custom_call.1} parent=1 // pred_check_branch
      %54 = sbr.rel (0) target = $region17
    $region16: #{tpu_custom_call.1} parent=1 // pred_region
      %56 = vsyncadd [#allocation9], 0
      %s57 = sshll.u32 %s3, 4
      %s58 = int_to_ptr.hbm [resolvable:$true] %s57
      %s59 = sshll.u32 [#allocation8], 4
      %s60 = int_to_ptr.vmem [resolvable:$true] %s59
      %65 = dma.hbm_to_vmem [thread:$0]  %s58, 1024, %s60, [#allocation9], 64, 64, 4
    $region17: #{tpu_custom_call.1} parent=1 // pred_fallthru
      _
    // Predicated region
    $region18: #{tpu_custom_call.1} parent=1 // pred_check
      _
    $region19: #{tpu_custom_call.1} parent=1 // pred_check_branch
      %67 = sbr.rel (0) target = $region21
    $region20: #{tpu_custom_call.1} parent=1 // pred_region
      %69 = vsyncadd [#allocation9], 0
      %s71 = sshll.u32 %s4, 4
      %s72 = int_to_ptr.hbm [resolvable:$true] %s71
      %s73 = sshll.u32 [#allocation10], 4
      %s74 = int_to_ptr.vmem [resolvable:$true] %s73
      %76 = dma.hbm_to_vmem [thread:$0]  %s72, 128, %s74, [#allocation9]
    $region21: #{tpu_custom_call.1} parent=1 // pred_fallthru
      _
    // Predicated region
    $region22: #{tpu_custom_call.1} parent=1 // pred_check
      _
    $region23: #{tpu_custom_call.1} parent=1 // pred_check_branch
      %78 = sbr.rel (0) target = $region25
    $region24: #{tpu_custom_call.1} parent=1 // pred_region
      %80 = dma.done [#allocation3], 128
    $region25: #{tpu_custom_call.1} parent=1 // pred_fallthru
      _
    // Predicated region
    $region26: #{tpu_custom_call.1} parent=1 // pred_check
      _
    $region27: #{tpu_custom_call.1} parent=1 // pred_check_branch
      %82 = sbr.rel (0) target = $region29
    $region28: #{tpu_custom_call.1} parent=1 // pred_region
      %84 = dma.done [#allocation6], 1024
    $region29: #{tpu_custom_call.1} parent=1 // pred_fallthru
      _
    // Predicated region
    $region30: #{tpu_custom_call.1} parent=1 // pred_check
      _
    $region31: #{tpu_custom_call.1} parent=1 // pred_check_branch
      %86 = sbr.rel (0) target = $region33
    $region32: #{tpu_custom_call.1} parent=1 // pred_region
      %88 = dma.done [#allocation6], 1024
    $region33: #{tpu_custom_call.1} parent=1 // pred_fallthru
      _
    // Predicated region
    $region34: #{tpu_custom_call.1} parent=1 // pred_check
      _
    $region35: #{tpu_custom_call.1} parent=1 // pred_check_branch
      %90 = sbr.rel (0) target = $region37
    $region36: #{tpu_custom_call.1} parent=1 // pred_region
      %92 = dma.done [#allocation9], 1024
    $region37: #{tpu_custom_call.1} parent=1 // pred_fallthru
      _
    // Predicated region
    $region38: #{tpu_custom_call.1} parent=1 // pred_check
      _
    $region39: #{tpu_custom_call.1} parent=1 // pred_check_branch
      %94 = sbr.rel (0) target = $region41
    $region40: #{tpu_custom_call.1} parent=1 // pred_region
      %96 = dma.done [#allocation9], 128
    $region41: #{tpu_custom_call.1} parent=1 // pred_fallthru
      _
    %v97 = vld [vmem:[#allocation2] sm:$0xf]
    %v98 = vld [vmem:[#allocation2 + $0x4] sm:$0xf]
    %v99 = vld [vmem:[#allocation5] sm:$0xf]
    %v100 = vld [vmem:[#allocation5 + $0x4] sm:$0xf]
    %v101 = vld [vmem:[#allocation5 + $0x8] sm:$0xf]
    %v102 = vld [vmem:[#allocation5 + $0xc] sm:$0xf]
    %v103 = vld [vmem:[#allocation5 + $0x10] sm:$0xf]
    %v104 = vld [vmem:[#allocation5 + $0x14] sm:$0xf]
    %v105 = vld [vmem:[#allocation5 + $0x18] sm:$0xf]
    %v106 = vld [vmem:[#allocation5 + $0x1c] sm:$0xf]
    %v107 = vld [vmem:[#allocation5 + $0x20] sm:$0xf]
    %v108 = vld [vmem:[#allocation5 + $0x24] sm:$0xf]
    %v109 = vld [vmem:[#allocation5 + $0x28] sm:$0xf]
    %v110 = vld [vmem:[#allocation5 + $0x2c] sm:$0xf]
    %v111 = vld [vmem:[#allocation5 + $0x30] sm:$0xf]
    %v112 = vld [vmem:[#allocation5 + $0x34] sm:$0xf]
    %v113 = vld [vmem:[#allocation5 + $0x38] sm:$0xf]
    %v114 = vld [vmem:[#allocation5 + $0x3c] sm:$0xf]
    %v115 = vld [vmem:[#allocation10] sm:$0x1]
    %v116 = vperm.slane %v115, 0
    %v119 = vunpack.c.l.b16 %v97
    %v120 = vunpack.c.l.b16 %v98
    %v121 = vpack.c.b16 %v120, %v119
    %v139 = vunpack.c.l.b16 %v99
    %v140 = vunpack.c.l.b16 %v100
    %v141 = vunpack.c.l.b16 %v101
    %v142 = vunpack.c.l.b16 %v102
    %v143 = vunpack.c.l.b16 %v103
    %v144 = vunpack.c.l.b16 %v104
    %v145 = vunpack.c.l.b16 %v105
    %v146 = vunpack.c.l.b16 %v106
    %v147 = vunpack.c.l.b16 %v107
    %v148 = vunpack.c.l.b16 %v108
    %v149 = vunpack.c.l.b16 %v109
    %v150 = vunpack.c.l.b16 %v110
    %v151 = vunpack.c.l.b16 %v111
    %v152 = vunpack.c.l.b16 %v112
    %v153 = vunpack.c.l.b16 %v113
    %v154 = vunpack.c.l.b16 %v114
    %v155 = vpack.c.b16 %v140, %v139
    %v156 = vpack.c.b16 %v142, %v141
    %v157 = vpack.c.b16 %v144, %v143
    %v158 = vpack.c.b16 %v146, %v145
    %v159 = vpack.c.b16 %v148, %v147
    %v160 = vpack.c.b16 %v150, %v149
    %v161 = vpack.c.b16 %v152, %v151
    %v162 = vpack.c.b16 %v154, %v153
    %171 = vmatpush.bf16.msra.mxu0 %v162
    %172 = vmatpush.bf16.msra.mxu0 %v161
    %173 = vmatpush.bf16.msra.mxu0 %v160
    %174 = vmatpush.bf16.msra.mxu0 %v159
    %175 = vmatpush.bf16.msra.mxu0 %v158
    %176 = vmatpush.bf16.msra.mxu0 %v157
    %177 = vmatpush.bf16.msra.mxu0 %v156
    %178 = vmatpush.bf16.msra.mxu0 %v155
    %179 = vmatmul.bf16.gmra.mxu0 %v121
    %v180 = vpop.f32.mrf.mxu0
    %v181 = vadd.f32 %v116, %v180
    %v182 = vpop.f32.mrf.mxu0
    %v183 = vadd.f32 %v116, %v182
    %184 = vdwg.mxu0
    %v185 = vmax.f32 %v181, 0.0
    %v186 = vmax.f32 %v183, 0.0
    %v187 = vld [vmem:[#allocation7] sm:$0xf]
    %v188 = vld [vmem:[#allocation7 + $0x4] sm:$0xf]
    %v189 = vld [vmem:[#allocation7 + $0x8] sm:$0xf]
    %v190 = vld [vmem:[#allocation7 + $0xc] sm:$0xf]
    %v191 = vld [vmem:[#allocation7 + $0x10] sm:$0xf]
    %v192 = vld [vmem:[#allocation7 + $0x14] sm:$0xf]
    %v193 = vld [vmem:[#allocation7 + $0x18] sm:$0xf]
    %v194 = vld [vmem:[#allocation7 + $0x1c] sm:$0xf]
    %v195 = vld [vmem:[#allocation7 + $0x20] sm:$0xf]
    %v196 = vld [vmem:[#allocation7 + $0x24] sm:$0xf]
    %v197 = vld [vmem:[#allocation7 + $0x28] sm:$0xf]
    %v198 = vld [vmem:[#allocation7 + $0x2c] sm:$0xf]
    %v199 = vld [vmem:[#allocation7 + $0x30] sm:$0xf]
    %v200 = vld [vmem:[#allocation7 + $0x34] sm:$0xf]
    %v201 = vld [vmem:[#allocation7 + $0x38] sm:$0xf]
    %v202 = vld [vmem:[#allocation7 + $0x3c] sm:$0xf]
    %v203 = vld [vmem:[#allocation10 + $0x1] sm:$0x1]
    %v204 = vpack.c.bf16 %v186, %v185
    %v205 = vperm.slane %v203, 0
    %v222 = vunpack.c.l.b16 %v187
    %v223 = vunpack.c.l.b16 %v188
    %v224 = vunpack.c.l.b16 %v189
    %v225 = vunpack.c.l.b16 %v190
    %v226 = vunpack.c.l.b16 %v191
    %v227 = vunpack.c.l.b16 %v192
    %v228 = vunpack.c.l.b16 %v193
    %v229 = vunpack.c.l.b16 %v194
    %v230 = vunpack.c.l.b16 %v195
    %v231 = vunpack.c.l.b16 %v196
    %v232 = vunpack.c.l.b16 %v197
    %v233 = vunpack.c.l.b16 %v198
    %v234 = vunpack.c.l.b16 %v199
    %v235 = vunpack.c.l.b16 %v200
    %v236 = vunpack.c.l.b16 %v201
    %v237 = vunpack.c.l.b16 %v202
    %v238 = vpack.c.b16 %v223, %v222
    %v239 = vpack.c.b16 %v225, %v224
    %v240 = vpack.c.b16 %v227, %v226
    %v241 = vpack.c.b16 %v229, %v228
    %v242 = vpack.c.b16 %v231, %v230
    %v243 = vpack.c.b16 %v233, %v232
    %v244 = vpack.c.b16 %v235, %v234
    %v245 = vpack.c.b16 %v237, %v236
    %254 = vmatpush.bf16.msra.mxu0 %v245
    %255 = vmatpush.bf16.msra.mxu0 %v244
    %256 = vmatpush.bf16.msra.mxu0 %v243
    %257 = vmatpush.bf16.msra.mxu0 %v242
    %258 = vmatpush.bf16.msra.mxu0 %v241
    %259 = vmatpush.bf16.msra.mxu0 %v240
    %260 = vmatpush.bf16.msra.mxu0 %v239
    %261 = vmatpush.bf16.msra.mxu0 %v238
    %262 = vmatmul.bf16.gmra.mxu0 %v204
    %v263 = vpop.f32.mrf.mxu0
    %v264 = vadd.f32 %v205, %v263
    %v265 = vpop.f32.mrf.mxu0
    %v266 = vadd.f32 %v205, %v265
    %267 = vdwg.mxu0
    %v268 = vmax.f32 %v264, 0.0
    %v269 = vmax.f32 %v266, 0.0
    %v270 = vld [vmem:[#allocation8] sm:$0xf]
    %v271 = vld [vmem:[#allocation8 + $0x4] sm:$0xf]
    %v272 = vld [vmem:[#allocation8 + $0x8] sm:$0xf]
    %v273 = vld [vmem:[#allocation8 + $0xc] sm:$0xf]
    %v274 = vld [vmem:[#allocation8 + $0x10] sm:$0xf]
    %v275 = vld [vmem:[#allocation8 + $0x14] sm:$0xf]
    %v276 = vld [vmem:[#allocation8 + $0x18] sm:$0xf]
    %v277 = vld [vmem:[#allocation8 + $0x1c] sm:$0xf]
    %v278 = vld [vmem:[#allocation8 + $0x20] sm:$0xf]
    %v279 = vld [vmem:[#allocation8 + $0x24] sm:$0xf]
    %v280 = vld [vmem:[#allocation8 + $0x28] sm:$0xf]
    %v281 = vld [vmem:[#allocation8 + $0x2c] sm:$0xf]
    %v282 = vld [vmem:[#allocation8 + $0x30] sm:$0xf]
    %v283 = vld [vmem:[#allocation8 + $0x34] sm:$0xf]
    %v284 = vld [vmem:[#allocation8 + $0x38] sm:$0xf]
    %v285 = vld [vmem:[#allocation8 + $0x3c] sm:$0xf]
    %v286 = vld [vmem:[#allocation10 + $0x2] sm:$0x1]
    %v287 = vpack.c.bf16 %v269, %v268
    %v288 = vperm.slane %v286, 0
    %v305 = vunpack.c.l.b16 %v270
    %v306 = vunpack.c.l.b16 %v271
    %v307 = vunpack.c.l.b16 %v272
    %v308 = vunpack.c.l.b16 %v273
    %v309 = vunpack.c.l.b16 %v274
    %v310 = vunpack.c.l.b16 %v275
    %v311 = vunpack.c.l.b16 %v276
    %v312 = vunpack.c.l.b16 %v277
    %v313 = vunpack.c.l.b16 %v278
    %v314 = vunpack.c.l.b16 %v279
    %v315 = vunpack.c.l.b16 %v280
    %v316 = vunpack.c.l.b16 %v281
    %v317 = vunpack.c.l.b16 %v282
    %v318 = vunpack.c.l.b16 %v283
    %v319 = vunpack.c.l.b16 %v284
    %v320 = vunpack.c.l.b16 %v285
    %v321 = vpack.c.b16 %v306, %v305
    %v322 = vpack.c.b16 %v308, %v307
    %v323 = vpack.c.b16 %v310, %v309
    %v324 = vpack.c.b16 %v312, %v311
    %v325 = vpack.c.b16 %v314, %v313
    %v326 = vpack.c.b16 %v316, %v315
    %v327 = vpack.c.b16 %v318, %v317
    %v328 = vpack.c.b16 %v320, %v319
    %337 = vmatpush.bf16.msra.mxu0 %v328
    %338 = vmatpush.bf16.msra.mxu0 %v327
    %339 = vmatpush.bf16.msra.mxu0 %v326
    %340 = vmatpush.bf16.msra.mxu0 %v325
    %341 = vmatpush.bf16.msra.mxu0 %v324
    %342 = vmatpush.bf16.msra.mxu0 %v323
    %343 = vmatpush.bf16.msra.mxu0 %v322
    %344 = vmatpush.bf16.msra.mxu0 %v321
    %345 = vmatmul.bf16.gmra.mxu0 %v287
    %v346 = vpop.f32.mrf.mxu0
    %v347 = vadd.f32 %v288, %v346
    %v348 = vpop.f32.mrf.mxu0
    %v349 = vadd.f32 %v288, %v348
    %350 = vdwg.mxu0
    %351 = vst [vmem:[#allocation11] sm:$0xff] %v347
    %352 = vst [vmem:[#allocation11 + $0x8] sm:$0xff] %v349
    // Predicated region
    $region42: #{tpu_custom_call.1} parent=1 // pred_check
      _
    $region43: #{tpu_custom_call.1} parent=1 // pred_check_branch
      %354 = sbr.rel (0) target = $region45
    $region44: #{tpu_custom_call.1} parent=1 // pred_region
      %356 = vsyncadd [#allocation4], 0
      %s357 = sshll.u32 [#allocation11], 4
      %s358 = int_to_ptr.vmem [resolvable:$true] %s357
      %s359 = sshll.u32 %s5, 4
      %s360 = int_to_ptr.hbm [resolvable:$true] %s359
      %365 = dma.vmem_to_hbm [thread:$0]  %s358, 256, %s360, [#allocation4], 128, 128, 8
    $region45: #{tpu_custom_call.1} parent=1 // pred_fallthru
      _
    // Predicated region
    $region46: #{tpu_custom_call.1} parent=1 // pred_check
      _
    $region47: #{tpu_custom_call.1} parent=1 // pred_check_branch
      %367 = sbr.rel (0) target = $region49
    $region48: #{tpu_custom_call.1} parent=1 // pred_region
      %369 = dma.done [#allocation4], 256
    $region49: #{tpu_custom_call.1} parent=1 // pred_fallthru
      _
    %370 = vsyncpa [#allocation3], 1
    %371 = vsyncpa [#allocation6], 1
    %372 = vsyncpa [#allocation9], 1
    %373 = vsyncpa [#allocation4], 1

</llo_original>
